<compile_context>
chip_gen: v5e
topology: v5e:2x2
jax: 0.10.0
libtpu: 0.0.40
codegen_flags: <defaults>
</compile_context>

<pallas_src>
import jax
import jax.numpy as jnp
from jax.experimental import pallas as pl
from jax.experimental.pallas import tpu as pltpu


# ----------------------------------------------------------------------------
# Pallas kernel: fused 3-layer MLP (Linear+ReLU, Linear+ReLU, Linear+Tanh)
# followed by the action rescale  a * scale + bias.
#   oc_ref packs rows: [b_out ; action_scale ; action_bias]   (3, d_out_p)
# ----------------------------------------------------------------------------
def _actor_kernel(x_ref, w1_ref, b1_ref, w2_ref, b2_ref, w3_ref, oc_ref, o_ref):
    wdt = w1_ref.dtype  # f32 by default; bf16 if weights were quantized
    # layer 1: Linear + ReLU (MXU, f32 accumulation)
    h = jnp.dot(x_ref[...].astype(wdt), w1_ref[...],
                preferred_element_type=jnp.float32)
    h = jnp.maximum(h + b1_ref[...], 0.0)
    # layer 2: Linear + ReLU
    h = jnp.dot(h.astype(wdt), w2_ref[...], preferred_element_type=jnp.float32)
    h = jnp.maximum(h + b2_ref[...], 0.0)
    # output layer: Linear + Tanh (tanh rides the EUP slot)
    a = jnp.dot(h.astype(wdt), w3_ref[...], preferred_element_type=jnp.float32)
    a = jnp.tanh(a + oc_ref[0:1, :])
    # action rescale (padded columns have scale=0, bias=0 -> stay exactly 0)
    o_ref[...] = (a * oc_ref[1:2, :] + oc_ref[2:3, :]).astype(o_ref.dtype)


# ----------------------------------------------------------------------------
# Batch-tile heuristic.
# ----------------------------------------------------------------------------
def _pick_batch_tile(B):
    # Default: whole batch in one grid step (each extra step costs ~0.35 us of
    # bookkeeping + an extra x/out DMA pair, and x/out tiles of any realistic
    # actor batch fit VMEM comfortably).  Only very large batches get split so
    # the "parallel" axis can be sharded across v7x's two TensorCores; the
    # 256-row tiles keep per-step overhead well amortized even when the grid
    # is just a serial loop (v5e/v6e).
    if B >= 512:
        for t in (256, 128, 64):
            if B % t == 0:
                return t
    return B  # single whole-batch step (block == full array dims is legal)


def _round_up(n, m=128):
    return ((n + m - 1) // m) * m


def prepare_actor_params(params, action_scale, action_bias, *,
                         weights_dtype=jnp.float32):
    """Zero-pad hidden/output feature dims to multiples of 128 and pack the
    output-layer constants; done once, outside the forward pass.

    weights_dtype=jnp.bfloat16 halves weight DMA/VMEM (MXU still accumulates
    in f32); default f32 matches the PyTorch module numerics exactly.
    Returns (padded_params, d_out)."""
    w1, b1, w2, b2, w3, b3 = params
    d_h1, d_h2, d_out = w1.shape[1], w2.shape[1], w3.shape[1]
    p_h1, p_h2, p_out = _round_up(d_h1), _round_up(d_h2), _round_up(d_out)

    def pad2(a, rows, cols, dt=jnp.float32):
        a = a.astype(dt)
        return jnp.pad(a, ((0, rows - a.shape[0]), (0, cols - a.shape[1])))

    w1p = pad2(w1, w1.shape[0], p_h1, weights_dtype)
    b1p = pad2(b1.reshape(1, -1), 1, p_h1)
    w2p = pad2(w2, p_h1, p_h2, weights_dtype)
    b2p = pad2(b2.reshape(1, -1), 1, p_h2)
    w3p = pad2(w3, p_h2, p_out, weights_dtype)
    # pack [b_out ; action_scale ; action_bias] into one (3, p_out) operand
    out_consts = jnp.concatenate([
        pad2(b3.reshape(1, -1), 1, p_out),
        pad2(action_scale.reshape(1, -1), 1, p_out),
        pad2(action_bias.reshape(1, -1), 1, p_out),
    ], axis=0)
    return (w1p, b1p, w2p, b2p, w3p, out_consts), d_out


def actor_forward(x, padded_params, d_out, *, batch_tile=None,
                  return_padded=False):
    """Pallas-backed ActorDeterministic forward.  x: [B, input_dim] f32."""
    w1, b1, w2, b2, w3, oc = padded_params
    B, d_in = x.shape
    d_h1, d_h2, d_out_p = w1.shape[1], w2.shape[1], w3.shape[1]

    bt = _pick_batch_tile(B) if batch_tile is None else batch_tile
    assert B % bt == 0, "batch must be divisible by the chosen batch tile"
    grid = (B // bt,)

    # Constant operands: index_map is always (0, 0) -> single-buffer them so
    # the default double-buffering doesn't duplicate the weights in VMEM.
    const_mode = pl.Buffered(buffer_count=1)

    def const_spec(shape):
        return pl.BlockSpec(shape, lambda i: (0, 0), pipeline_mode=const_mode)

    # Explicit VMEM budget from the actual operands: single-buffered consts,
    # double-buffered x/out tiles, activation headroom, plus margin.  The
    # default scoped limit (16/32 MiB) is the binding constraint long before
    # physical VMEM for larger hidden dims.
    const_bytes = sum(int(a.size) * a.dtype.itemsize
                      for a in (w1, b1, w2, b2, w3, oc))
    io_bytes = 2 * bt * (d_in + d_out_p) * 4
    act_bytes = 2 * bt * max(d_h1, d_h2) * 4
    vmem_limit = min(int(1.25 * (const_bytes + io_bytes + act_bytes)) + (4 << 20),
                     64 << 20)

    out = pl.pallas_call(
        _actor_kernel,
        out_shape=jax.ShapeDtypeStruct((B, d_out_p), jnp.float32),
        grid_spec=pltpu.PrefetchScalarGridSpec(
            num_scalar_prefetch=0,
            grid=grid,
            in_specs=[
                pl.BlockSpec((bt, d_in), lambda i: (i, 0)),   # x tile
                const_spec((d_in, d_h1)),                     # W1
                const_spec((1, d_h1)),                        # b1
                const_spec((d_h1, d_h2)),                     # W2
                const_spec((1, d_h2)),                        # b2
                const_spec((d_h2, d_out_p)),                  # W3
                const_spec((3, d_out_p)),                     # [b3; scale; bias]
            ],
            out_specs=pl.BlockSpec((bt, d_out_p), lambda i: (i, 0)),
        ),
        compiler_params=pltpu.CompilerParams(
            dimension_semantics=("parallel",),
            vmem_limit_bytes=vmem_limit),
    )(x, w1, b1, w2, b2, w3, oc)

    if return_padded:
        # Let the consumer fuse the column slice (saves one HBM pass; mainly
        # relevant for large B on v5e's lower HBM bandwidth).
        return out
    return out[:, :d_out]


# ----------------------------------------------------------------------------
# Deterministic parameter construction (mirrors nn.Linear init, stored as
# [D_in, D_out] so the kernel computes x @ W + b directly on the MXU).
# ----------------------------------------------------------------------------
def init_actor_params(key, input_dim, hidden_dims, output_dim):
    dims = [input_dim] + list(hidden_dims) + [output_dim]
    params = []
    for i in range(len(dims) - 1):
        key, kw, kb = jax.random.split(key, 3)
        bound = 1.0 / jnp.sqrt(jnp.float32(dims[i]))
        w = jax.random.uniform(kw, (dims[i], dims[i + 1]), jnp.float32,
                               -bound, bound)
        b = jax.random.uniform(kb, (1, dims[i + 1]), jnp.float32,
                               -bound, bound)
        params += [w, b]
    return tuple(params)


# Pure-JAX reference for correctness checking
def actor_ref(x, params, action_scale, action_bias):
    w1, b1, w2, b2, w3, b3 = params
    h = jnp.maximum(x @ w1 + b1, 0.0)
    h = jnp.maximum(h @ w2 + b2, 0.0)
    a = jnp.tanh(h @ w3 + b3)
    return a * action_scale.reshape(1, -1) + action_bias.reshape(1, -1)


if __name__ == "__main__":
    key = jax.random.PRNGKey(0)
    k_x, k_p, k_hi, k_lo = jax.random.split(key, 4)

    # small shapes: batch=16, obs_dim=16, hidden=[32,32], action_dim=8
    B, obs_dim, act_dim = 16, 16, 8
    hidden_dims = [32, 32]

    x = jax.random.normal(k_x, (B, obs_dim), jnp.float32)
    params = init_actor_params(k_p, obs_dim, hidden_dims, act_dim)

    action_high = jnp.abs(jax.random.normal(k_hi, (act_dim,), jnp.float32)) + 1.0
    action_low = -(jnp.abs(jax.random.normal(k_lo, (act_dim,), jnp.float32)) + 0.5)
    action_scale = (action_high - action_low) / 2.0
    action_bias = (action_high + action_low) / 2.0

    padded_params, d_out = prepare_actor_params(params, action_scale, action_bias)

    out = actor_forward(x, padded_params, d_out)
    out = jax.block_until_ready(out)

    out_ref = actor_ref(x, params, action_scale, action_bias)
    assert out.shape == (B, act_dim)
    assert jnp.allclose(out, out_ref, atol=1e-5, rtol=1e-5), "mismatch vs reference"

    print("KERNEL_OK")
</pallas_src>

<mosaic_0001>
module attributes {stable_mosaic.version = 11 : i64} {
  func.func @_actor_kernel(%arg0: i32, %arg1: memref<16x16xf32, #tpu.memory_space<vmem>>, %arg2: memref<16x128xf32, #tpu.memory_space<vmem>>, %arg3: memref<1x128xf32, #tpu.memory_space<vmem>>, %arg4: memref<128x128xf32, #tpu.memory_space<vmem>>, %arg5: memref<1x128xf32, #tpu.memory_space<vmem>>, %arg6: memref<128x128xf32, #tpu.memory_space<vmem>>, %arg7: memref<3x128xf32, #tpu.memory_space<vmem>>, %arg8: memref<16x128xf32, #tpu.memory_space<vmem>>) attributes {dimension_semantics = [#tpu.dimension_semantics<parallel>], iteration_bounds = array<i64: 1>, scalar_prefetch = 0 : i64, scratch_operands = 0 : i64, tpu.core_type = #tpu.core_type<tc>, window_params = [{transform_indices = @transform_0, window_bounds = array<i64: 16, 16>}, {pipeline_mode = #tpu.pipeline_mode<synchronous>, transform_indices = @transform_1, window_bounds = array<i64: 16, 128>}, {pipeline_mode = #tpu.pipeline_mode<synchronous>, transform_indices = @transform_2, window_bounds = array<i64: 1, 128>}, {pipeline_mode = #tpu.pipeline_mode<synchronous>, transform_indices = @transform_3, window_bounds = array<i64: 128, 128>}, {pipeline_mode = #tpu.pipeline_mode<synchronous>, transform_indices = @transform_4, window_bounds = array<i64: 1, 128>}, {pipeline_mode = #tpu.pipeline_mode<synchronous>, transform_indices = @transform_5, window_bounds = array<i64: 128, 128>}, {pipeline_mode = #tpu.pipeline_mode<synchronous>, transform_indices = @transform_6, window_bounds = array<i64: 3, 128>}, {transform_indices = @transform_7, window_bounds = array<i64: 16, 128>}]} {
    %c0 = arith.constant 0 : index
    %c0_0 = arith.constant 0 : index
    %0 = vector.load %arg1[%c0, %c0_0] : memref<16x16xf32, #tpu.memory_space<vmem>>, vector<16x16xf32>
    %c0_1 = arith.constant 0 : index
    %c0_2 = arith.constant 0 : index
    %1 = vector.load %arg2[%c0_1, %c0_2] : memref<16x128xf32, #tpu.memory_space<vmem>>, vector<16x128xf32>
    %cst = arith.constant dense<0.000000e+00> : vector<16x128xf32>
    %2 = tpu.matmul %0, %1, %cst {dimension_numbers = #tpu.dot_dimension_numbers<[1], [0], [0], [1], [0, 0, 1, 1], [], []>} : vector<16x16xf32>, vector<16x128xf32>, vector<16x128xf32> -> vector<16x128xf32>
    %c0_3 = arith.constant 0 : index
    %c0_4 = arith.constant 0 : index
    %3 = vector.load %arg3[%c0_3, %c0_4] : memref<1x128xf32, #tpu.memory_space<vmem>>, vector<1x128xf32>
    %4 = vector.broadcast %3 : vector<1x128xf32> to vector<16x128xf32>
    %5 = arith.addf %2, %4 : vector<16x128xf32>
    %cst_5 = arith.constant 0.000000e+00 : f32
    %6 = vector.broadcast %cst_5 : f32 to vector<16x128xf32>
    %7 = arith.maximumf %5, %6 : vector<16x128xf32>
    %c0_6 = arith.constant 0 : index
    %c0_7 = arith.constant 0 : index
    %8 = vector.load %arg4[%c0_6, %c0_7] : memref<128x128xf32, #tpu.memory_space<vmem>>, vector<128x128xf32>
    %cst_8 = arith.constant dense<0.000000e+00> : vector<16x128xf32>
    %9 = tpu.matmul %7, %8, %cst_8 {dimension_numbers = #tpu.dot_dimension_numbers<[1], [0], [0], [1], [0, 0, 1, 1], [], []>} : vector<16x128xf32>, vector<128x128xf32>, vector<16x128xf32> -> vector<16x128xf32>
    %c0_9 = arith.constant 0 : index
    %c0_10 = arith.constant 0 : index
    %10 = vector.load %arg5[%c0_9, %c0_10] : memref<1x128xf32, #tpu.memory_space<vmem>>, vector<1x128xf32>
    %11 = vector.broadcast %10 : vector<1x128xf32> to vector<16x128xf32>
    %12 = arith.addf %9, %11 : vector<16x128xf32>
    %cst_11 = arith.constant 0.000000e+00 : f32
    %13 = vector.broadcast %cst_11 : f32 to vector<16x128xf32>
    %14 = arith.maximumf %12, %13 : vector<16x128xf32>
    %c0_12 = arith.constant 0 : index
    %c0_13 = arith.constant 0 : index
    %15 = vector.load %arg6[%c0_12, %c0_13] : memref<128x128xf32, #tpu.memory_space<vmem>>, vector<128x128xf32>
    %cst_14 = arith.constant dense<0.000000e+00> : vector<16x128xf32>
    %16 = tpu.matmul %14, %15, %cst_14 {dimension_numbers = #tpu.dot_dimension_numbers<[1], [0], [0], [1], [0, 0, 1, 1], [], []>} : vector<16x128xf32>, vector<128x128xf32>, vector<16x128xf32> -> vector<16x128xf32>
    %c0_15 = arith.constant 0 : index
    %c0_16 = arith.constant 0 : index
    %17 = vector.load %arg7[%c0_15, %c0_16] : memref<3x128xf32, #tpu.memory_space<vmem>>, vector<1x128xf32>
    %18 = vector.broadcast %17 : vector<1x128xf32> to vector<16x128xf32>
    %19 = arith.addf %16, %18 : vector<16x128xf32>
    %20 = math.tanh %19 : vector<16x128xf32>
    %c1 = arith.constant 1 : index
    %c0_17 = arith.constant 0 : index
    %21 = vector.load %arg7[%c1, %c0_17] : memref<3x128xf32, #tpu.memory_space<vmem>>, vector<1x128xf32>
    %22 = vector.broadcast %21 : vector<1x128xf32> to vector<16x128xf32>
    %23 = arith.mulf %20, %22 : vector<16x128xf32>
    %c2 = arith.constant 2 : index
    %c0_18 = arith.constant 0 : index
    %24 = vector.load %arg7[%c2, %c0_18] : memref<3x128xf32, #tpu.memory_space<vmem>>, vector<1x128xf32>
    %25 = vector.broadcast %24 : vector<1x128xf32> to vector<16x128xf32>
    %26 = arith.addf %23, %25 : vector<16x128xf32>
    %c0_19 = arith.constant 0 : index
    %c0_20 = arith.constant 0 : index
    %27 = vector.load %arg8[%c0_19, %c0_20] : memref<16x128xf32, #tpu.memory_space<vmem>>, vector<16x128xf32>
    tpu.vector_store %arg8[%c0_19, %c0_20], %26 {strides = array<i32>} : memref<16x128xf32, #tpu.memory_space<vmem>>, vector<16x128xf32>,
    return
  }
  func.func @transform_0(%arg0: i32) -> (i32, i32) {
    %c0_i32 = arith.constant 0 : i32
    %c0_i32_0 = arith.constant 0 : i32
    return %arg0, %c0_i32 : i32, i32
  }
  func.func @transform_1(%arg0: i32) -> (i32, i32) {
    %c0_i32 = arith.constant 0 : i32
    %c0_i32_0 = arith.constant 0 : i32
    %c0_i32_1 = arith.constant 0 : i32
    return %c0_i32, %c0_i32_0 : i32, i32
  }
  func.func @transform_2(%arg0: i32) -> (i32, i32) {
    %c0_i32 = arith.constant 0 : i32
    %c0_i32_0 = arith.constant 0 : i32
    %c0_i32_1 = arith.constant 0 : i32
    return %c0_i32, %c0_i32_0 : i32, i32
  }
  func.func @transform_3(%arg0: i32) -> (i32, i32) {
    %c0_i32 = arith.constant 0 : i32
    %c0_i32_0 = arith.constant 0 : i32
    %c0_i32_1 = arith.constant 0 : i32
    return %c0_i32, %c0_i32_0 : i32, i32
  }
  func.func @transform_4(%arg0: i32) -> (i32, i32) {
    %c0_i32 = arith.constant 0 : i32
    %c0_i32_0 = arith.constant 0 : i32
    %c0_i32_1 = arith.constant 0 : i32
    return %c0_i32, %c0_i32_0 : i32, i32
  }
  func.func @transform_5(%arg0: i32) -> (i32, i32) {
    %c0_i32 = arith.constant 0 : i32
    %c0_i32_0 = arith.constant 0 : i32
    %c0_i32_1 = arith.constant 0 : i32
    return %c0_i32, %c0_i32_0 : i32, i32
  }
  func.func @transform_6(%arg0: i32) -> (i32, i32) {
    %c0_i32 = arith.constant 0 : i32
    %c0_i32_0 = arith.constant 0 : i32
    %c0_i32_1 = arith.constant 0 : i32
    return %c0_i32, %c0_i32_0 : i32, i32
  }
  func.func @transform_7(%arg0: i32) -> (i32, i32) {
    %c0_i32 = arith.constant 0 : i32
    %c0_i32_0 = arith.constant 0 : i32
    return %arg0, %c0_i32 : i32, i32
  }
}

</mosaic_0001>

<llo_original>
// kernel: tpu_custom_call.1
$region0: #{tpu_custom_call.1}
  #allocation0 [shape = 'u32[]', space=smem, size = 0x4, offset = 0x4, fixed_abs, tag = 'smem constant byte address 0x4 - core index']
  #allocation1 [shape = 'u32[72,128]{1,0:T(1,128)}', space=vmem, size = 0x9000, scoped, tag = 'internal scratch']
  %s0 = inlined_call_operand.hbm [shape: f32[16,16], index: 0, kind: input, shape index: {}]
  %s1 = inlined_call_operand.hbm [shape: f32[16,128], index: 1, kind: input, shape index: {}]
  %s2 = inlined_call_operand.vmem [shape: f32[1,128], index: 2, kind: input, shape index: {}]
  %s3 = inlined_call_operand.hbm [shape: f32[128,128], index: 3, kind: input, shape index: {}]
  %s4 = inlined_call_operand.hbm [shape: f32[1,128], index: 4, kind: input, shape index: {}]
  %s5 = inlined_call_operand.hbm [shape: f32[128,128], index: 5, kind: input, shape index: {}]
  %s6 = inlined_call_operand.vmem [shape: f32[3,128], index: 6, kind: input, shape index: {}]
  %s7 = inlined_call_operand.hbm [shape: f32[16,128], index: 7, kind: output, shape index: {}]
  %s8 = sld [smem:[#allocation0]]
  $region58: #{tpu_custom_call.1} parent=0
    _
  %s10 = ssub.s32 1, %s8
  %s11 = scalar_select 0, %s10, %s8
  $region1: #{tpu_custom_call.1} parent=0
    #allocation2 [shape = 'u8[8192]{0}', space=vmem, size = 0x2000, scoped, tag = 'input window, operand 0, single buffered']
    #allocation3 [shape = 's32[1]{0}', space=sflag, size = 0x4, scoped, tag = 'scoped memory for tpu_custom_call.1']
    #allocation4 [shape = 's32[1]{0}', space=sflag, size = 0x4, scoped, tag = 'scoped memory for tpu_custom_call.1']
    #allocation5 [shape = 'u8[8192]{0}', space=vmem, size = 0x2000, scoped, tag = 'input window, operand 1, single buffered']
    #allocation6 [shape = 's32[1]{0}', space=sflag, size = 0x4, scoped, tag = 'scoped memory for tpu_custom_call.1']
    #allocation7 [shape = 'u8[65536]{0}', space=vmem, size = 0x10000, scoped, tag = 'input window, operand 3, single buffered']
    #allocation8 [shape = 'u8[512]{0}', space=vmem, size = 0x400, scoped, tag = 'input window, operand 4, single buffered']
    #allocation9 [shape = 's32[1]{0}', space=sflag, size = 0x4, scoped, tag = 'scoped memory for tpu_custom_call.1']
    #allocation10 [shape = 'u8[65536]{0}', space=vmem, size = 0x10000, scoped, tag = 'input window, operand 5, single buffered']
    #allocation11 [shape = 'u8[8192]{0}', space=vmem, size = 0x2000, scoped, tag = 'output window, operand 0, single buffered']
    %12 = vsyncpa [#allocation3], 0
    %13 = vsyncpa [#allocation6], 0
    %14 = vsyncpa [#allocation9], 0
    %15 = vsyncpa [#allocation4], 0
    // Predicated region
    $region2: #{tpu_custom_call.1} parent=1 // pred_check
      _
    $region3: #{tpu_custom_call.1} parent=1 // pred_check_branch
      %17 = sbr.rel (0) target = $region5
    $region4: #{tpu_custom_call.1} parent=1 // pred_region
      %19 = vsyncadd [#allocation3], 0
      %s20 = sshll.u32 %s0, 4
      %s21 = int_to_ptr.hbm [resolvable:$true] %s20
      %s22 = sshll.u32 [#allocation2], 4
      %s23 = int_to_ptr.vmem [resolvable:$true] %s22
      %28 = dma.hbm_to_vmem [thread:$0]  %s21, 256, %s23, [#allocation3], 128, 128, 8
    $region5: #{tpu_custom_call.1} parent=1 // pred_fallthru
      _
    // Predicated region
    $region6: #{tpu_custom_call.1} parent=1 // pred_check
      _
    $region7: #{tpu_custom_call.1} parent=1 // pred_check_branch
      %30 = sbr.rel (0) target = $region9
    $region8: #{tpu_custom_call.1} parent=1 // pred_region
      %32 = vsyncadd [#allocation6], 0
      %s33 = sshll.u32 %s1, 4
      %s34 = int_to_ptr.hbm [resolvable:$true] %s33
      %s35 = sshll.u32 [#allocation5], 4
      %s36 = int_to_ptr.vmem [resolvable:$true] %s35
      %41 = dma.hbm_to_vmem [thread:$0]  %s34, 256, %s36, [#allocation6], 128, 128, 8
    $region9: #{tpu_custom_call.1} parent=1 // pred_fallthru
      _
    // Predicated region
    $region10: #{tpu_custom_call.1} parent=1 // pred_check
      _
    $region11: #{tpu_custom_call.1} parent=1 // pred_check_branch
      %43 = sbr.rel (0) target = $region13
    $region12: #{tpu_custom_call.1} parent=1 // pred_region
      _
    $region13: #{tpu_custom_call.1} parent=1 // pred_fallthru
      _
    // Predicated region
    $region14: #{tpu_custom_call.1} parent=1 // pred_check
      _
    $region15: #{tpu_custom_call.1} parent=1 // pred_check_branch
      %45 = sbr.rel (0) target = $region17
    $region16: #{tpu_custom_call.1} parent=1 // pred_region
      %47 = vsyncadd [#allocation6], 0
      %s48 = sshll.u32 %s3, 4
      %s49 = int_to_ptr.hbm [resolvable:$true] %s48
      %s50 = sshll.u32 [#allocation7], 4
      %s51 = int_to_ptr.vmem [resolvable:$true] %s50
      %56 = dma.hbm_to_vmem [thread:$0]  %s49, 2048, %s51, [#allocation6], 128, 128, 8
    $region17: #{tpu_custom_call.1} parent=1 // pred_fallthru
      _
    // Predicated region
    $region18: #{tpu_custom_call.1} parent=1 // pred_check
      _
    $region19: #{tpu_custom_call.1} parent=1 // pred_check_branch
      %58 = sbr.rel (0) target = $region21
    $region20: #{tpu_custom_call.1} parent=1 // pred_region
      %60 = vsyncadd [#allocation9], 0
      %s62 = sshll.u32 %s4, 4
      %s63 = int_to_ptr.hbm [resolvable:$true] %s62
      %s64 = sshll.u32 [#allocation8], 4
      %s65 = int_to_ptr.vmem [resolvable:$true] %s64
      %67 = dma.hbm_to_vmem [thread:$0]  %s63, 16, %s65, [#allocation9]
    $region21: #{tpu_custom_call.1} parent=1 // pred_fallthru
      _
    // Predicated region
    $region22: #{tpu_custom_call.1} parent=1 // pred_check
      _
    $region23: #{tpu_custom_call.1} parent=1 // pred_check_branch
      %69 = sbr.rel (0) target = $region25
    $region24: #{tpu_custom_call.1} parent=1 // pred_region
      %71 = vsyncadd [#allocation9], 0
      %s72 = sshll.u32 %s5, 4
      %s73 = int_to_ptr.hbm [resolvable:$true] %s72
      %s74 = sshll.u32 [#allocation10], 4
      %s75 = int_to_ptr.vmem [resolvable:$true] %s74
      %80 = dma.hbm_to_vmem [thread:$0]  %s73, 2048, %s75, [#allocation9], 128, 128, 8
    $region25: #{tpu_custom_call.1} parent=1 // pred_fallthru
      _
    // Predicated region
    $region26: #{tpu_custom_call.1} parent=1 // pred_check
      _
    $region27: #{tpu_custom_call.1} parent=1 // pred_check_branch
      %82 = sbr.rel (0) target = $region29
    $region28: #{tpu_custom_call.1} parent=1 // pred_region
      _
    $region29: #{tpu_custom_call.1} parent=1 // pred_fallthru
      _
    // Predicated region
    $region30: #{tpu_custom_call.1} parent=1 // pred_check
      _
    $region31: #{tpu_custom_call.1} parent=1 // pred_check_branch
      %84 = sbr.rel (0) target = $region33
    $region32: #{tpu_custom_call.1} parent=1 // pred_region
      %86 = dma.done [#allocation3], 256
    $region33: #{tpu_custom_call.1} parent=1 // pred_fallthru
      _
    // Predicated region
    $region34: #{tpu_custom_call.1} parent=1 // pred_check
      _
    $region35: #{tpu_custom_call.1} parent=1 // pred_check_branch
      %88 = sbr.rel (0) target = $region37
    $region36: #{tpu_custom_call.1} parent=1 // pred_region
      %90 = dma.done [#allocation6], 256
    $region37: #{tpu_custom_call.1} parent=1 // pred_fallthru
      _
    // Predicated region
    $region38: #{tpu_custom_call.1} parent=1 // pred_check
      _
    $region39: #{tpu_custom_call.1} parent=1 // pred_check_branch
      %92 = sbr.rel (0) target = $region41
    $region40: #{tpu_custom_call.1} parent=1 // pred_region
      %94 = dma.done [#allocation6], 2048
    $region41: #{tpu_custom_call.1} parent=1 // pred_fallthru
      _
    // Predicated region
    $region42: #{tpu_custom_call.1} parent=1 // pred_check
      _
    $region43: #{tpu_custom_call.1} parent=1 // pred_check_branch
      %96 = sbr.rel (0) target = $region45
    $region44: #{tpu_custom_call.1} parent=1 // pred_region
      %98 = dma.done [#allocation9], 16
    $region45: #{tpu_custom_call.1} parent=1 // pred_fallthru
      _
    // Predicated region
    $region46: #{tpu_custom_call.1} parent=1 // pred_check
      _
    $region47: #{tpu_custom_call.1} parent=1 // pred_check_branch
      %100 = sbr.rel (0) target = $region49
    $region48: #{tpu_custom_call.1} parent=1 // pred_region
      %102 = dma.done [#allocation9], 2048
    $region49: #{tpu_custom_call.1} parent=1 // pred_fallthru
      _
    %v103 = vld [vmem:[#allocation2] sm:$0xff]
    %v104 = vld [vmem:[#allocation2 + $0x8] sm:$0xff]
    %v105 = vld [vmem:[#allocation5] sm:$0xff]
    %v106 = vld [vmem:[#allocation5 + $0x8] sm:$0xff]
    %v107 = vld [vmem:[%s2] sm:$0x1]
    %v109 = vperm.slane %v107, 0
    %vm111 = vcmask 130048
    %v113 = vsel %vm111, %v103, 0
    %v116 = vsel %vm111, %v104, 0
    %118 = vmatpush.msra.mxu0 0.0
    %119 = vmatpush.msra.mxu0 0.0
    %120 = vmatpush.msra.mxu0 0.0
    %121 = vmatpush.msra.mxu0 0.0
    %122 = vmatpush.msra.mxu0 0.0
    %123 = vmatpush.msra.mxu0 0.0
    %124 = vmatpush.msra.mxu0 0.0
    %125 = vmatpush.msra.mxu0 0.0
    %126 = vmatpush.msra.mxu0 0.0
    %127 = vmatpush.msra.mxu0 0.0
    %128 = vmatpush.msra.mxu0 0.0
    %129 = vmatpush.msra.mxu0 0.0
    %130 = vmatpush.msra.mxu0 0.0
    %131 = vmatpush.msra.mxu0 0.0
    %132 = vmatpush.msra.mxu0 %v106
    %133 = vmatpush.msra.mxu0 %v105
    %134 = vmatmul.f32.gmra.mxu0 %v113
    %v135 = vpop.f32.mrf.mxu0
    %v136 = vadd.f32 %v109, %v135
    %137 = vmatmul.f32.gmra.mxu0 %v116
    %v138 = vpop.f32.mrf.mxu0
    %v139 = vadd.f32 %v109, %v138
    %140 = vdwg.mxu0
    %v141 = vmax.f32 %v136, 0.0
    %v142 = vmax.f32 %v139, 0.0
    %v143 = vld [vmem:[#allocation7] sm:$0xff]
    %v144 = vld [vmem:[#allocation7 + $0x8] sm:$0xff]
    %v145 = vld [vmem:[#allocation7 + $0x10] sm:$0xff]
    %v146 = vld [vmem:[#allocation7 + $0x18] sm:$0xff]
    %v147 = vld [vmem:[#allocation7 + $0x20] sm:$0xff]
    %v148 = vld [vmem:[#allocation7 + $0x28] sm:$0xff]
    %v149 = vld [vmem:[#allocation7 + $0x30] sm:$0xff]
    %v150 = vld [vmem:[#allocation7 + $0x38] sm:$0xff]
    %v151 = vld [vmem:[#allocation7 + $0x40] sm:$0xff]
    %v152 = vld [vmem:[#allocation7 + $0x48] sm:$0xff]
    %v153 = vld [vmem:[#allocation7 + $0x50] sm:$0xff]
    %v154 = vld [vmem:[#allocation7 + $0x58] sm:$0xff]
    %v155 = vld [vmem:[#allocation7 + $0x60] sm:$0xff]
    %v156 = vld [vmem:[#allocation7 + $0x68] sm:$0xff]
    %v157 = vld [vmem:[#allocation7 + $0x70] sm:$0xff]
    %v158 = vld [vmem:[#allocation7 + $0x78] sm:$0xff]
    %v159 = vld [vmem:[#allocation8] sm:$0x1]
    %v161 = vperm.slane %v159, 0
    %163 = vmatpush.msra.mxu0 %v158
    %164 = vmatpush.msra.mxu0 %v157
    %165 = vmatpush.msra.mxu0 %v156
    %166 = vmatpush.msra.mxu0 %v155
    %167 = vmatpush.msra.mxu0 %v154
    %168 = vmatpush.msra.mxu0 %v153
    %169 = vmatpush.msra.mxu0 %v152
    %170 = vmatpush.msra.mxu0 %v151
    %171 = vmatpush.msra.mxu0 %v150
    %172 = vmatpush.msra.mxu0 %v149
    %173 = vmatpush.msra.mxu0 %v148
    %174 = vmatpush.msra.mxu0 %v147
    %175 = vmatpush.msra.mxu0 %v146
    %176 = vmatpush.msra.mxu0 %v145
    %177 = vmatpush.msra.mxu0 %v144
    %178 = vmatpush.msra.mxu0 %v143
    %179 = vmatmul.f32.gmra.mxu0 %v141
    %v180 = vpop.f32.mrf.mxu0
    %v181 = vadd.f32 %v161, %v180
    %182 = vmatmul.f32.gmra.mxu0 %v142
    %v183 = vpop.f32.mrf.mxu0
    %v184 = vadd.f32 %v161, %v183
    %185 = vdwg.mxu0
    %v186 = vmax.f32 %v181, 0.0
    %v187 = vmax.f32 %v184, 0.0
    %v188 = vld [vmem:[#allocation10] sm:$0xff]
    %v189 = vld [vmem:[#allocation10 + $0x8] sm:$0xff]
    %v190 = vld [vmem:[#allocation10 + $0x10] sm:$0xff]
    %v191 = vld [vmem:[#allocation10 + $0x18] sm:$0xff]
    %v192 = vld [vmem:[#allocation10 + $0x20] sm:$0xff]
    %v193 = vld [vmem:[#allocation10 + $0x28] sm:$0xff]
    %v194 = vld [vmem:[#allocation10 + $0x30] sm:$0xff]
    %v195 = vld [vmem:[#allocation10 + $0x38] sm:$0xff]
    %v196 = vld [vmem:[#allocation10 + $0x40] sm:$0xff]
    %v197 = vld [vmem:[#allocation10 + $0x48] sm:$0xff]
    %v198 = vld [vmem:[#allocation10 + $0x50] sm:$0xff]
    %v199 = vld [vmem:[#allocation10 + $0x58] sm:$0xff]
    %v200 = vld [vmem:[#allocation10 + $0x60] sm:$0xff]
    %v201 = vld [vmem:[#allocation10 + $0x68] sm:$0xff]
    %v202 = vld [vmem:[#allocation10 + $0x70] sm:$0xff]
    %v203 = vld [vmem:[#allocation10 + $0x78] sm:$0xff]
    %v204 = vld [vmem:[%s6] sm:$0x1]
    %v205 = vperm.slane %v204, 0
    %206 = vmatpush.msra.mxu0 %v203
    %207 = vmatpush.msra.mxu0 %v202
    %208 = vmatpush.msra.mxu0 %v201
    %209 = vmatpush.msra.mxu0 %v200
    %210 = vmatpush.msra.mxu0 %v199
    %211 = vmatpush.msra.mxu0 %v198
    %212 = vmatpush.msra.mxu0 %v197
    %213 = vmatpush.msra.mxu0 %v196
    %214 = vmatpush.msra.mxu0 %v195
    %215 = vmatpush.msra.mxu0 %v194
    %216 = vmatpush.msra.mxu0 %v193
    %217 = vmatpush.msra.mxu0 %v192
    %218 = vmatpush.msra.mxu0 %v191
    %219 = vmatpush.msra.mxu0 %v190
    %220 = vmatpush.msra.mxu0 %v189
    %221 = vmatpush.msra.mxu0 %v188
    %222 = vmatmul.f32.gmra.mxu0 %v186
    %v223 = vpop.f32.mrf.mxu0
    %v224 = vadd.f32 %v205, %v223
    %225 = vmatmul.f32.gmra.mxu0 %v187
    %v226 = vpop.f32.mrf.mxu0
    %v227 = vadd.f32 %v205, %v226
    %228 = vdwg.mxu0
    %v229 = vtanh.pop %v224
    %v230 = vtanh.pop %v227
    %v231 = vld [vmem:[%s6 + $0x1] sm:$0x1]
    %v232 = vperm.slane %v231, 0
    %v233 = vmul.f32 %v229, %v232
    %v234 = vmul.f32 %v230, %v232
    %v235 = vld [vmem:[%s6 + $0x2] sm:$0x1]
    %v236 = vperm.slane %v235, 0
    %v237 = vadd.f32 %v233, %v236
    %v238 = vadd.f32 %v234, %v236
    %239 = vst [vmem:[#allocation11] sm:$0xff] %v237
    %240 = vst [vmem:[#allocation11 + $0x8] sm:$0xff] %v238
    // Predicated region
    $region50: #{tpu_custom_call.1} parent=1 // pred_check
      _
    $region51: #{tpu_custom_call.1} parent=1 // pred_check_branch
      %242 = sbr.rel (0) target = $region53
    $region52: #{tpu_custom_call.1} parent=1 // pred_region
      %244 = vsyncadd [#allocation4], 0
      %s245 = sshll.u32 [#allocation11], 4
      %s246 = int_to_ptr.vmem [resolvable:$true] %s245
      %s247 = sshll.u32 %s7, 4
      %s248 = int_to_ptr.hbm [resolvable:$true] %s247
      %253 = dma.vmem_to_hbm [thread:$0]  %s246, 256, %s248, [#allocation4], 128, 128, 8
    $region53: #{tpu_custom_call.1} parent=1 // pred_fallthru
      _
    // Predicated region
    $region54: #{tpu_custom_call.1} parent=1 // pred_check
      _
    $region55: #{tpu_custom_call.1} parent=1 // pred_check_branch
      %255 = sbr.rel (0) target = $region57
    $region56: #{tpu_custom_call.1} parent=1 // pred_region
      %257 = dma.done [#allocation4], 256
    $region57: #{tpu_custom_call.1} parent=1 // pred_fallthru
      _
    %258 = vsyncpa [#allocation3], 1
    %259 = vsyncpa [#allocation6], 1
    %260 = vsyncpa [#allocation9], 1
    %261 = vsyncpa [#allocation4], 1

</llo_original>
